<compile_context>
chip_gen: v6e
topology: v6e:2x2x1
jax: 0.10.0
libtpu: 0.0.40
codegen_flags: <defaults>
</compile_context>

<pallas_src>
import functools

import numpy as np

import jax
import jax.numpy as jnp
from jax.experimental import pallas as pl
from jax.experimental.pallas import tpu as pltpu


def round_up(n, m):
    return ((n + m - 1) // m) * m


# ----------------------------------------------------------------------------
# Fused LeNet forward kernel (conv1 -> pool -> conv2 -> pool -> fc head -> argmax)
# ----------------------------------------------------------------------------
def _lenet_kernel(x_ref, a1, b1, s1e, s1o, a2, b2, s2e, s2o, rsel,
                  wf1, bf1, wf2, bf2, wf3, bf3, o_ref,
                  sx, sc1, sp1, sc2, *, num_classes):
    f32, bf16 = jnp.float32, jnp.bfloat16
    R = x_ref.shape[0]                       # 32 rows per sample in this tile

    def mm(a, b):
        # bf16 operands, f32 accumulation on the MXU
        return jnp.dot(a.astype(bf16), b.astype(bf16),
                       preferred_element_type=f32)

    # stage the input rows so the 5 row-shifted conv windows stay in bounds
    sx[0:R, :] = x_ref[...]
    sx[R:R + 8, :] = jnp.zeros((8, 128), f32)

    # conv1 (5x5, 3->6) + bias + ReLU: 5 banded matmuls over row-shifted views
    y = mm(sx[0:R, :], a1[0])
    for ki in range(1, 5):
        y = y + mm(sx[ki:ki + R, :], a1[ki])
    y = jnp.maximum(y + b1[...], 0.0)        # rows b*32+i, cols 6*j+o

    # maxpool 2x2: exact 0/1 column-pair selection matmuls + adjacent-row max
    c1 = jnp.maximum(mm(y, s1e[...]), mm(y, s1o[...]))
    sc1[0:R, :] = c1
    sc1[R:R + 8, :] = jnp.zeros((8, 128), f32)
    sp1[0:R, :] = jnp.maximum(sc1[0:R, :], sc1[1:1 + R, :])
    sp1[R:R + 16, :] = jnp.zeros((16, 128), f32)   # rows b*32+2p, cols 6*q+o

    # conv2 (5x5, 6->16) + bias + ReLU (pooled map has row stride 2)
    y = mm(sp1[0:R, :], a2[0])
    for ki in range(1, 5):
        y = y + mm(sp1[2 * ki:2 * ki + R, :], a2[ki])
    y = jnp.maximum(y + b2[...], 0.0)        # rows b*32+2*i2, cols 16*j2+o2

    # maxpool 2x2
    c2 = jnp.maximum(mm(y, s2e[...]), mm(y, s2o[...]))
    sc2[0:R, :] = c2
    sc2[R:R + 8, :] = jnp.zeros((8, 128), f32)
    p2 = jnp.maximum(sc2[0:R, :], sc2[2:2 + R, :])  # rows b*32+4*p, cols 16*q+o

    # flatten (torch NCHW order folded into wf1 packing) + fc1 + ReLU
    z = mm(mm(rsel[0], p2), wf1[0])
    for s in range(1, 5):
        z = z + mm(mm(rsel[s], p2), wf1[s])
    z = jnp.maximum(z + bf1[...], 0.0)
    # fc2 + ReLU, fc3
    z = jnp.maximum(mm(z, wf2[...]) + bf2[...], 0.0)
    logits = mm(z, wf3[...]) + bf3[...]

    # argmax over valid classes (softmax dropped: argmax(softmax(x)) == argmax(x))
    col = jax.lax.broadcasted_iota(jnp.int32, logits.shape, 1)
    logits = jnp.where(col < num_classes, logits,
                       jnp.full_like(logits, -jnp.inf))
    m = jnp.max(logits, axis=-1, keepdims=True)
    pred = jnp.min(jnp.where(logits >= m, col,
                             jnp.full_like(col, logits.shape[-1])),
                   axis=-1, keepdims=True)               # (B_tile, 1) int32
    o_ref[...] = jnp.broadcast_to(pred, o_ref.shape)     # lane-dense store


def pack_lenet(params, b_tile=8):
    """Pack LeNet params into padded / banded / bf16 tensors for the fused
    kernel.  Executed once per aggregation round (hoisted out of the forward)."""
    f32, bf16 = jnp.float32, jnp.bfloat16
    w1, b1 = params["c1_w"], params["c1_b"]          # (6,3,5,5), (6,)
    w2, b2 = params["c2_w"], params["c2_b"]          # (16,6,5,5), (16,)
    f1w, f1b = params["f1_w"], params["f1_b"]        # (400,120), (120,)
    f2w, f2b = params["f2_w"], params["f2_b"]        # (120,84), (84,)
    f3w, f3b = params["f3_w"], params["f3_b"]        # (84,10), (10,)

    # conv1 banded weights: A1[ki][3*(j+kj)+c, 6*j+o] = w1[o,c,ki,kj]
    ki, o, c, kj, j = np.meshgrid(np.arange(5), np.arange(6), np.arange(3),
                                  np.arange(5), np.arange(28), indexing="ij")
    a1 = jnp.zeros((5, 128, 256), f32).at[
        ki.ravel(), (3 * (j + kj) + c).ravel(), (6 * j + o).ravel()].set(
        w1[o.ravel(), c.ravel(), ki.ravel(), kj.ravel()])

    # conv2 banded weights: A2[ki][6*(j2+kj)+c2, 16*j2+o2] = w2[o2,c2,ki,kj]
    ki, o2, c2, kj, j2 = np.meshgrid(np.arange(5), np.arange(16), np.arange(6),
                                     np.arange(5), np.arange(10), indexing="ij")
    a2 = jnp.zeros((5, 128, 256), f32).at[
        ki.ravel(), (6 * (j2 + kj) + c2).ravel(), (16 * j2 + o2).ravel()].set(
        w2[o2.ravel(), c2.ravel(), ki.ravel(), kj.ravel()])

    # biases broadcast over the (spatial, channel) column layouts
    j, o = np.meshgrid(np.arange(28), np.arange(6), indexing="ij")
    b1row = jnp.zeros((1, 256), f32).at[0, (6 * j + o).ravel()].set(b1[o.ravel()])
    j2, o2 = np.meshgrid(np.arange(10), np.arange(16), indexing="ij")
    b2row = jnp.zeros((1, 256), f32).at[0, (16 * j2 + o2).ravel()].set(b2[o2.ravel()])

    # maxpool column-pair selection matrices (exact 0/1 passthrough)
    s1e = np.zeros((256, 128), np.float32)
    s1o = np.zeros((256, 128), np.float32)
    for q in range(14):
        for ch in range(6):
            s1e[12 * q + ch, 6 * q + ch] = 1.0
            s1o[12 * q + 6 + ch, 6 * q + ch] = 1.0
    s2e = np.zeros((256, 128), np.float32)
    s2o = np.zeros((256, 128), np.float32)
    for q in range(5):
        for ch in range(16):
            s2e[32 * q + ch, 16 * q + ch] = 1.0
            s2o[32 * q + 16 + ch, 16 * q + ch] = 1.0

    # fc1: fold torch's NCHW flatten (o2*25 + p2*5 + q2) into 5 per-row-slab
    # weight blocks; rsel extracts row 4*p2 of every sample in the batch tile.
    f1wp = jnp.zeros((400, 128), f32).at[:, :120].set(f1w)
    p2i, q2i, o2i = np.meshgrid(np.arange(5), np.arange(5), np.arange(16),
                                indexing="ij")
    wf1 = jnp.zeros((5, 128, 128), f32).at[
        p2i.ravel(), (16 * q2i + o2i).ravel()].set(
        f1wp[(o2i * 25 + p2i * 5 + q2i).ravel()])
    rsel = np.zeros((5, b_tile, b_tile * 32), np.float32)
    for p in range(5):
        for b in range(b_tile):
            rsel[p, b, b * 32 + 4 * p] = 1.0

    wf2 = jnp.zeros((128, 128), f32).at[:120, :84].set(f2w)
    wf3 = jnp.zeros((128, 128), f32).at[:84, :10].set(f3w)
    bf1 = jnp.zeros((1, 128), f32).at[0, :120].set(f1b)
    bf2 = jnp.zeros((1, 128), f32).at[0, :84].set(f2b)
    bf3 = jnp.zeros((1, 128), f32).at[0, :10].set(f3b)

    return {
        "a1": a1.astype(bf16), "b1": b1row,
        "s1e": jnp.asarray(s1e, bf16), "s1o": jnp.asarray(s1o, bf16),
        "a2": a2.astype(bf16), "b2": b2row,
        "s2e": jnp.asarray(s2e, bf16), "s2o": jnp.asarray(s2o, bf16),
        "rsel": jnp.asarray(rsel, bf16),
        "wf1": wf1.astype(bf16), "bf1": bf1,
        "wf2": wf2.astype(bf16), "bf2": bf2,
        "wf3": wf3.astype(bf16), "bf3": bf3,
    }


_PACKED_KEYS = ("a1", "b1", "s1e", "s1o", "a2", "b2", "s2e", "s2o",
                "rsel", "wf1", "bf1", "wf2", "bf2", "wf3", "bf3")


@jax.jit
def lenet_predict(packed, x_nchw):
    """x: (B,3,32,32) NCHW -> (B,) int32 predictions; whole net in one kernel."""
    B = x_nchw.shape[0]
    b_tile = packed["rsel"].shape[1]
    assert B % b_tile == 0
    r_tile = b_tile * 32

    # minimal activation prep: NHWC, rows = (b,h), cols = w*3+c, pad lanes to 128
    x = jnp.transpose(x_nchw, (0, 2, 3, 1)).reshape(B * 32, 96)
    x = jnp.pad(x, ((0, 0), (0, 32))).astype(jnp.float32)

    w_args = [packed[k] for k in _PACKED_KEYS]
    w_specs = [pl.BlockSpec(a.shape, (lambda nd: (lambda i: (0,) * nd))(a.ndim))
               for a in w_args]

    preds = pl.pallas_call(
        functools.partial(_lenet_kernel, num_classes=10),
        out_shape=jax.ShapeDtypeStruct((B, 128), jnp.int32),
        grid=(B // b_tile,),
        in_specs=[pl.BlockSpec((r_tile, 128), lambda i: (i, 0))] + w_specs,
        out_specs=pl.BlockSpec((b_tile, 128), lambda i: (i, 0)),
        scratch_shapes=[
            pltpu.VMEM((r_tile + 8, 128), jnp.float32),    # staged input rows
            pltpu.VMEM((r_tile + 8, 128), jnp.float32),    # col-pooled conv1
            pltpu.VMEM((r_tile + 16, 128), jnp.float32),   # pooled conv1
            pltpu.VMEM((r_tile + 8, 128), jnp.float32),    # col-pooled conv2
        ],
        compiler_params=pltpu.CompilerParams(
            dimension_semantics=("parallel",)),
    )(x, *w_args)
    return preds[:, 0]


# ----------------------------------------------------------------------------
# server_add_trigger: zero rows/cols 27..30 of every channel
# ----------------------------------------------------------------------------
def _trigger_kernel(x_ref, o_ref, *, width):
    x = x_ref[...]
    idx = jax.lax.broadcasted_iota(jnp.int32, x.shape, 1)
    r = idx // width
    c = idx % width
    mask = (r >= 27) & (r <= 30) & (c >= 27) & (c <= 30)
    o_ref[...] = jnp.where(mask, jnp.zeros_like(x), x)


def pallas_add_trigger(images):
    B, C, H, W = images.shape
    flat = images.reshape(B * C, H * W)          # lane-dense (24, 1024) view
    out = pl.pallas_call(
        functools.partial(_trigger_kernel, width=W),
        out_shape=jax.ShapeDtypeStruct((B * C, H * W), images.dtype),
        grid=(1,),
        in_specs=[pl.BlockSpec((B * C, H * W), lambda i: (0, 0))],
        out_specs=pl.BlockSpec((B * C, H * W), lambda i: (0, 0)),
    )(flat)
    return out.reshape(B, C, H, W)


# ----------------------------------------------------------------------------
# FedAVG aggregation: exact f32 VPU weighted sum, single dense grid step
# ----------------------------------------------------------------------------
def _fedavg_kernel(w_ref, x_ref, o_ref):
    acc = x_ref[0] * w_ref[0]
    for c in range(1, x_ref.shape[0]):
        acc = acc + x_ref[c] * w_ref[c]
    o_ref[...] = acc


def pallas_fedavg(stacked, weights):
    """stacked: (C, P) flattened client params, weights: (C,) -> (P,) f32."""
    C, P = stacked.shape
    rows = pl.cdiv(P, 1024)
    rowsp = round_up(rows, 8)
    pp = rowsp * 1024
    xp = jnp.zeros((C, pp), jnp.float32).at[:, :P].set(
        stacked.astype(jnp.float32)).reshape(C, rowsp, 1024)
    wv = weights.astype(jnp.float32).reshape(C, 1, 1)
    out = pl.pallas_call(
        _fedavg_kernel,
        out_shape=jax.ShapeDtypeStruct((rowsp, 1024), jnp.float32),
        grid=(1,),
        in_specs=[pl.BlockSpec((C, 1, 1), lambda i: (0, 0, 0)),
                  pl.BlockSpec((C, rowsp, 1024), lambda i: (0, 0, 0))],
        out_specs=pl.BlockSpec((rowsp, 1024), lambda i: (0, 0)),
    )(wv, xp)
    return out.reshape(pp)[:P]


def flatten_params(p):
    leaves, treedef = jax.tree_util.tree_flatten(p)
    flat = jnp.concatenate([l.reshape(-1) for l in leaves])
    return flat, treedef, [l.shape for l in leaves]


def unflatten_params(flat, treedef, shapes):
    leaves, off = [], 0
    for s in shapes:
        n = 1
        for d in s:
            n *= d
        leaves.append(flat[off:off + n].reshape(s))
        off += n
    return jax.tree_util.tree_unflatten(treedef, leaves)


def fedavg_aggregate(client_param_list, weights):
    flats, treedef, shapes = [], None, None
    for p in client_param_list:
        f, treedef, shapes = flatten_params(p)
        flats.append(f)
    stacked = jnp.stack(flats)                     # (C, P)
    agg_flat = pallas_fedavg(stacked, weights)     # (P,) exact f32
    return unflatten_params(agg_flat, treedef, shapes)


# ----------------------------------------------------------------------------
# Parameters
# ----------------------------------------------------------------------------
def init_lenet_params(key):
    ks = jax.random.split(key, 10)
    return {
        "c1_w": jax.random.normal(ks[0], (6, 3, 5, 5), jnp.float32) * 0.1,
        "c1_b": jax.random.normal(ks[1], (6,), jnp.float32) * 0.1,
        "c2_w": jax.random.normal(ks[2], (16, 6, 5, 5), jnp.float32) * 0.1,
        "c2_b": jax.random.normal(ks[3], (16,), jnp.float32) * 0.1,
        "f1_w": jax.random.normal(ks[4], (400, 120), jnp.float32) * 0.05,
        "f1_b": jax.random.normal(ks[5], (120,), jnp.float32) * 0.05,
        "f2_w": jax.random.normal(ks[6], (120, 84), jnp.float32) * 0.05,
        "f2_b": jax.random.normal(ks[7], (84,), jnp.float32) * 0.05,
        "f3_w": jax.random.normal(ks[8], (84, 10), jnp.float32) * 0.05,
        "f3_b": jax.random.normal(ks[9], (10,), jnp.float32) * 0.05,
    }


# ----------------------------------------------------------------------------
# main
# ----------------------------------------------------------------------------
if __name__ == "__main__":
    key = jax.random.PRNGKey(0)
    k_img, k_lbl, k_net, k_cli = jax.random.split(key, 4)

    B = 8                    # per-branch batch; 3x32x32 (trigger needs >=31 px)
    B_TILE = 8               # samples per fused-kernel grid step
    test_x = jax.random.uniform(k_img, (B, 3, 32, 32), jnp.float32)
    test_y = jax.random.randint(k_lbl, (B,), 0, 10, jnp.int32)

    # "global net" + synthetic local client nets (meta_training stand-in)
    num_clients = 4
    global_params = init_lenet_params(k_net)
    client_keys = jax.random.split(k_cli, num_clients)
    client_params = [
        jax.tree_util.tree_map(
            lambda g, kk=ck: g + 0.01 * jax.random.normal(kk, g.shape, g.dtype),
            global_params)
        for ck in client_keys
    ]
    weights = jnp.full((num_clients,), 1.0 / num_clients, jnp.float32)

    # meta_training aggregation: global = sum_i w_i * client_i (exact f32 VPU)
    global_params = fedavg_aggregate(client_params, weights)

    # pack/pad/cast weights ONCE (hoisted out of the per-forward path)
    packed = pack_lenet(global_params, b_tile=B_TILE)

    # meta_test: trigger + clean evaluation in ONE concatenated forward
    test_x_trigger = pallas_add_trigger(test_x)
    x_all = jnp.concatenate([test_x_trigger, test_x], axis=0)   # (2B,3,32,32)
    preds_all = lenet_predict(packed, x_all)
    preds_trig, preds_clean = preds_all[:B], preds_all[B:]
    trigger_acc = jnp.mean((preds_trig == test_y).astype(jnp.float32))
    clean_acc = jnp.mean((preds_clean == test_y).astype(jnp.float32))

    for v in (preds_all, trigger_acc, clean_acc):
        jax.block_until_ready(v)

    # TODO(synk): dataset/file loading, DataLoader shuffling, per-client local
    # SGD (meta-)training loops and result saving are host-side control flow
    # with no Pallas equivalent and are out of scope for the kernels.
    print("KERNEL_OK")
</pallas_src>

<mosaic_0001>
module attributes {stable_mosaic.version = 11 : i64} {
  func.func @_fedavg_kernel(%arg0: i32, %arg1: memref<4x1x1xf32, #tpu.memory_space<vmem>>, %arg2: memref<4x64x1024xf32, #tpu.memory_space<vmem>>, %arg3: memref<64x1024xf32, #tpu.memory_space<vmem>>) attributes {dimension_semantics = [#tpu.dimension_semantics<arbitrary>], iteration_bounds = array<i64: 1>, scalar_prefetch = 0 : i64, scratch_operands = 0 : i64, tpu.core_type = #tpu.core_type<tc>, window_params = [{pipeline_mode = #tpu.pipeline_mode<synchronous>, transform_indices = @transform_0, window_bounds = array<i64: 4, 1, 1>}, {pipeline_mode = #tpu.pipeline_mode<synchronous>, transform_indices = @transform_1, window_bounds = array<i64: 4, 64, 1024>}, {pipeline_mode = #tpu.pipeline_mode<synchronous>, transform_indices = @transform_2, window_bounds = array<i64: 64, 1024>}]} {
    %c0 = arith.constant 0 : index
    %c0_0 = arith.constant 0 : index
    %c0_1 = arith.constant 0 : index
    %0 = vector.load %arg2[%c0, %c0_0, %c0_1] : memref<4x64x1024xf32, #tpu.memory_space<vmem>>, vector<1x64x1024xf32>
    %1 = vector.shape_cast %0 : vector<1x64x1024xf32> to vector<64x1024xf32>
    %c0_2 = arith.constant 0 : index
    %c0_3 = arith.constant 0 : index
    %c0_4 = arith.constant 0 : index
    %2 = vector.load %arg1[%c0_2, %c0_3, %c0_4] : memref<4x1x1xf32, #tpu.memory_space<vmem>>, vector<1x1x1xf32>
    %3 = vector.shape_cast %2 : vector<1x1x1xf32> to vector<1x1xf32>
    %4 = vector.broadcast %3 : vector<1x1xf32> to vector<64x1024xf32>
    %5 = arith.mulf %1, %4 : vector<64x1024xf32>
    %c1 = arith.constant 1 : index
    %c0_5 = arith.constant 0 : index
    %c0_6 = arith.constant 0 : index
    %6 = vector.load %arg2[%c1, %c0_5, %c0_6] : memref<4x64x1024xf32, #tpu.memory_space<vmem>>, vector<1x64x1024xf32>
    %7 = vector.shape_cast %6 : vector<1x64x1024xf32> to vector<64x1024xf32>
    %c1_7 = arith.constant 1 : index
    %c0_8 = arith.constant 0 : index
    %c0_9 = arith.constant 0 : index
    %8 = vector.load %arg1[%c1_7, %c0_8, %c0_9] : memref<4x1x1xf32, #tpu.memory_space<vmem>>, vector<1x1x1xf32>
    %9 = vector.shape_cast %8 : vector<1x1x1xf32> to vector<1x1xf32>
    %10 = vector.broadcast %9 : vector<1x1xf32> to vector<64x1024xf32>
    %11 = arith.mulf %7, %10 : vector<64x1024xf32>
    %12 = arith.addf %5, %11 : vector<64x1024xf32>
    %c2 = arith.constant 2 : index
    %c0_10 = arith.constant 0 : index
    %c0_11 = arith.constant 0 : index
    %13 = vector.load %arg2[%c2, %c0_10, %c0_11] : memref<4x64x1024xf32, #tpu.memory_space<vmem>>, vector<1x64x1024xf32>
    %14 = vector.shape_cast %13 : vector<1x64x1024xf32> to vector<64x1024xf32>
    %c2_12 = arith.constant 2 : index
    %c0_13 = arith.constant 0 : index
    %c0_14 = arith.constant 0 : index
    %15 = vector.load %arg1[%c2_12, %c0_13, %c0_14] : memref<4x1x1xf32, #tpu.memory_space<vmem>>, vector<1x1x1xf32>
    %16 = vector.shape_cast %15 : vector<1x1x1xf32> to vector<1x1xf32>
    %17 = vector.broadcast %16 : vector<1x1xf32> to vector<64x1024xf32>
    %18 = arith.mulf %14, %17 : vector<64x1024xf32>
    %19 = arith.addf %12, %18 : vector<64x1024xf32>
    %c3 = arith.constant 3 : index
    %c0_15 = arith.constant 0 : index
    %c0_16 = arith.constant 0 : index
    %20 = vector.load %arg2[%c3, %c0_15, %c0_16] : memref<4x64x1024xf32, #tpu.memory_space<vmem>>, vector<1x64x1024xf32>
    %21 = vector.shape_cast %20 : vector<1x64x1024xf32> to vector<64x1024xf32>
    %c3_17 = arith.constant 3 : index
    %c0_18 = arith.constant 0 : index
    %c0_19 = arith.constant 0 : index
    %22 = vector.load %arg1[%c3_17, %c0_18, %c0_19] : memref<4x1x1xf32, #tpu.memory_space<vmem>>, vector<1x1x1xf32>
    %23 = vector.shape_cast %22 : vector<1x1x1xf32> to vector<1x1xf32>
    %24 = vector.broadcast %23 : vector<1x1xf32> to vector<64x1024xf32>
    %25 = arith.mulf %21, %24 : vector<64x1024xf32>
    %26 = arith.addf %19, %25 : vector<64x1024xf32>
    %c0_20 = arith.constant 0 : index
    %c0_21 = arith.constant 0 : index
    %27 = vector.load %arg3[%c0_20, %c0_21] : memref<64x1024xf32, #tpu.memory_space<vmem>>, vector<64x1024xf32>
    tpu.vector_store %arg3[%c0_20, %c0_21], %26 {strides = array<i32>} : memref<64x1024xf32, #tpu.memory_space<vmem>>, vector<64x1024xf32>,
    return
  }
  func.func @transform_0(%arg0: i32) -> (i32, i32, i32) {
    %c0_i32 = arith.constant 0 : i32
    %c0_i32_0 = arith.constant 0 : i32
    %c0_i32_1 = arith.constant 0 : i32
    %c0_i32_2 = arith.constant 0 : i32
    return %c0_i32, %c0_i32_0, %c0_i32_1 : i32, i32, i32
  }
  func.func @transform_1(%arg0: i32) -> (i32, i32, i32) {
    %c0_i32 = arith.constant 0 : i32
    %c0_i32_0 = arith.constant 0 : i32
    %c0_i32_1 = arith.constant 0 : i32
    %c0_i32_2 = arith.constant 0 : i32
    return %c0_i32, %c0_i32_0, %c0_i32_1 : i32, i32, i32
  }
  func.func @transform_2(%arg0: i32) -> (i32, i32) {
    %c0_i32 = arith.constant 0 : i32
    %c0_i32_0 = arith.constant 0 : i32
    %c0_i32_1 = arith.constant 0 : i32
    return %c0_i32, %c0_i32_0 : i32, i32
  }
}

</mosaic_0001>

<llo_original>
// kernel: tpu_custom_call.1
$region0: #{tpu_custom_call.1}
  #allocation0 [shape = 'u32[]', space=smem, size = 0x4, offset = 0x4, fixed_abs, tag = 'smem constant byte address 0x4 - core index']
  #allocation1 [shape = 'u32[144,128]{1,0:T(1,128)}', space=vmem, size = 0x12000, scoped, tag = 'internal scratch']
  %s0 = inlined_call_operand.vmem [shape: f32[4,1,1], index: 0, kind: input, shape index: {}]
  %s1 = inlined_call_operand.hbm [shape: f32[4,64,1024], index: 1, kind: input, shape index: {}]
  %s2 = inlined_call_operand.hbm [shape: f32[64,1024], index: 2, kind: output, shape index: {}]
  %s3 = sld [smem:[#allocation0]]
  $region22: #{tpu_custom_call.1} parent=0
    _
  %s5 = ssub.s32 1, %s3
  %s6 = scalar_select 0, %s5, %s3
  $region1: #{tpu_custom_call.1} parent=0
    #allocation2 [shape = 'u8[1048576]{0}', space=vmem, size = 0x100000, scoped, tag = 'input window, operand 1, single buffered']
    #allocation3 [shape = 's32[1]{0}', space=sflag, size = 0x4, scoped, tag = 'scoped memory for tpu_custom_call.1']
    #allocation4 [shape = 's32[1]{0}', space=sflag, size = 0x4, scoped, tag = 'scoped memory for tpu_custom_call.1']
    #allocation5 [shape = 'u8[262144]{0}', space=vmem, size = 0x40000, scoped, tag = 'output window, operand 0, single buffered']
    %7 = vsyncpa [#allocation3], 0
    %8 = vsyncpa [#allocation4], 0
    // Predicated region
    $region2: #{tpu_custom_call.1} parent=1 // pred_check
      _
    $region3: #{tpu_custom_call.1} parent=1 // pred_check_branch
      %10 = sbr.rel (0) target = $region5
    $region4: #{tpu_custom_call.1} parent=1 // pred_region
      _
    $region5: #{tpu_custom_call.1} parent=1 // pred_fallthru
      _
    // Predicated region
    $region6: #{tpu_custom_call.1} parent=1 // pred_check
      _
    $region7: #{tpu_custom_call.1} parent=1 // pred_check_branch
      %12 = sbr.rel (0) target = $region9
    $region8: #{tpu_custom_call.1} parent=1 // pred_region
      %s14 = ssub.s32 32768, 32768
      %15 = vsyncadd [#allocation3], %s14
      %s16 = sshll.u32 [#allocation2], 4
      %s17 = int_to_ptr.vmem [resolvable:$true] %s16
      %22 = dma.hbm_to_vmem [thread:$0]  %s1, 32768, %s17, [#allocation3], 1024, 1024, 64
    $region9: #{tpu_custom_call.1} parent=1 // pred_fallthru
      _
    // Predicated region
    $region10: #{tpu_custom_call.1} parent=1 // pred_check
      _
    $region11: #{tpu_custom_call.1} parent=1 // pred_check_branch
      %24 = sbr.rel (0) target = $region13
    $region12: #{tpu_custom_call.1} parent=1 // pred_region
      %25 = dma.done [#allocation3], 32768
    $region13: #{tpu_custom_call.1} parent=1 // pred_fallthru
      _
    %v26 = vld [vmem:[#allocation2] sm:$0xff]
    %v27 = vld [vmem:[#allocation2 + $0x8] sm:$0xff]
    %v28 = vld [vmem:[#allocation2 + $0x10] sm:$0xff]
    %v29 = vld [vmem:[#allocation2 + $0x18] sm:$0xff]
    %v30 = vld [vmem:[#allocation2 + $0x20] sm:$0xff]
    %v31 = vld [vmem:[#allocation2 + $0x28] sm:$0xff]
    %v32 = vld [vmem:[#allocation2 + $0x30] sm:$0xff]
    %v33 = vld [vmem:[#allocation2 + $0x38] sm:$0xff]
    %v34 = vld [vmem:[#allocation2 + $0x40] sm:$0xff]
    %v35 = vld [vmem:[#allocation2 + $0x48] sm:$0xff]
    %v36 = vld [vmem:[#allocation2 + $0x50] sm:$0xff]
    %v37 = vld [vmem:[#allocation2 + $0x58] sm:$0xff]
    %v38 = vld [vmem:[#allocation2 + $0x60] sm:$0xff]
    %v39 = vld [vmem:[#allocation2 + $0x68] sm:$0xff]
    %v40 = vld [vmem:[#allocation2 + $0x70] sm:$0xff]
    %v41 = vld [vmem:[#allocation2 + $0x78] sm:$0xff]
    %v42 = vld [vmem:[#allocation2 + $0x80] sm:$0xff]
    %v43 = vld [vmem:[#allocation2 + $0x88] sm:$0xff]
    %v44 = vld [vmem:[#allocation2 + $0x90] sm:$0xff]
    %v45 = vld [vmem:[#allocation2 + $0x98] sm:$0xff]
    %v46 = vld [vmem:[#allocation2 + $0xa0] sm:$0xff]
    %v47 = vld [vmem:[#allocation2 + $0xa8] sm:$0xff]
    %v48 = vld [vmem:[#allocation2 + $0xb0] sm:$0xff]
    %v49 = vld [vmem:[#allocation2 + $0xb8] sm:$0xff]
    %v50 = vld [vmem:[#allocation2 + $0xc0] sm:$0xff]
    %v51 = vld [vmem:[#allocation2 + $0xc8] sm:$0xff]
    %v52 = vld [vmem:[#allocation2 + $0xd0] sm:$0xff]
    %v53 = vld [vmem:[#allocation2 + $0xd8] sm:$0xff]
    %v54 = vld [vmem:[#allocation2 + $0xe0] sm:$0xff]
    %v55 = vld [vmem:[#allocation2 + $0xe8] sm:$0xff]
    %v56 = vld [vmem:[#allocation2 + $0xf0] sm:$0xff]
    %v57 = vld [vmem:[#allocation2 + $0xf8] sm:$0xff]
    %v58 = vld [vmem:[#allocation2 + $0x100] sm:$0xff]
    %v59 = vld [vmem:[#allocation2 + $0x108] sm:$0xff]
    %v60 = vld [vmem:[#allocation2 + $0x110] sm:$0xff]
    %v61 = vld [vmem:[#allocation2 + $0x118] sm:$0xff]
    %v62 = vld [vmem:[#allocation2 + $0x120] sm:$0xff]
    %v63 = vld [vmem:[#allocation2 + $0x128] sm:$0xff]
    %v64 = vld [vmem:[#allocation2 + $0x130] sm:$0xff]
    %v65 = vld [vmem:[#allocation2 + $0x138] sm:$0xff]
    %v66 = vld [vmem:[#allocation2 + $0x140] sm:$0xff]
    %v67 = vld [vmem:[#allocation2 + $0x148] sm:$0xff]
    %v68 = vld [vmem:[#allocation2 + $0x150] sm:$0xff]
    %v69 = vld [vmem:[#allocation2 + $0x158] sm:$0xff]
    %v70 = vld [vmem:[#allocation2 + $0x160] sm:$0xff]
    %v71 = vld [vmem:[#allocation2 + $0x168] sm:$0xff]
    %v72 = vld [vmem:[#allocation2 + $0x170] sm:$0xff]
    %v73 = vld [vmem:[#allocation2 + $0x178] sm:$0xff]
    %v74 = vld [vmem:[#allocation2 + $0x180] sm:$0xff]
    %v75 = vld [vmem:[#allocation2 + $0x188] sm:$0xff]
    %v76 = vld [vmem:[#allocation2 + $0x190] sm:$0xff]
    %v77 = vld [vmem:[#allocation2 + $0x198] sm:$0xff]
    %v78 = vld [vmem:[#allocation2 + $0x1a0] sm:$0xff]
    %v79 = vld [vmem:[#allocation2 + $0x1a8] sm:$0xff]
    %v80 = vld [vmem:[#allocation2 + $0x1b0] sm:$0xff]
    %v81 = vld [vmem:[#allocation2 + $0x1b8] sm:$0xff]
    %v82 = vld [vmem:[#allocation2 + $0x1c0] sm:$0xff]
    %v83 = vld [vmem:[#allocation2 + $0x1c8] sm:$0xff]
    %v84 = vld [vmem:[#allocation2 + $0x1d0] sm:$0xff]
    %v85 = vld [vmem:[#allocation2 + $0x1d8] sm:$0xff]
    %v86 = vld [vmem:[#allocation2 + $0x1e0] sm:$0xff]
    %v87 = vld [vmem:[#allocation2 + $0x1e8] sm:$0xff]
    %v88 = vld [vmem:[#allocation2 + $0x1f0] sm:$0xff]
    %v89 = vld [vmem:[#allocation2 + $0x1f8] sm:$0xff]
    %v90 = vld [vmem:[%s0] sm:$0x1]
    %v92 = vlaneseq
    %v93 = vshrl.u32 %v92, 7
    %v94 = vsub.s32 0, %v93
    %v95 = vrot.slane %v90, %v94
    %96 = vset.pattern.permute.xlu0 0
    %97 = vperm.xlu0 %96, %v95
    %v98 = vpop.permute.xlu0 %97
    %v100 = vmul.f32 %v26, %v98
    %v101 = vmul.f32 %v27, %v98
    %v102 = vmul.f32 %v28, %v98
    %v103 = vmul.f32 %v29, %v98
    %v104 = vmul.f32 %v30, %v98
    %v105 = vmul.f32 %v31, %v98
    %v106 = vmul.f32 %v32, %v98
    %v107 = vmul.f32 %v33, %v98
    %v108 = vmul.f32 %v34, %v98
    %v109 = vmul.f32 %v35, %v98
    %v110 = vmul.f32 %v36, %v98
    %v111 = vmul.f32 %v37, %v98
    %v112 = vmul.f32 %v38, %v98
    %v113 = vmul.f32 %v39, %v98
    %v114 = vmul.f32 %v40, %v98
    %v115 = vmul.f32 %v41, %v98
    %v116 = vmul.f32 %v42, %v98
    %v117 = vmul.f32 %v43, %v98
    %v118 = vmul.f32 %v44, %v98
    %v119 = vmul.f32 %v45, %v98
    %v120 = vmul.f32 %v46, %v98
    %v121 = vmul.f32 %v47, %v98
    %v122 = vmul.f32 %v48, %v98
    %v123 = vmul.f32 %v49, %v98
    %v124 = vmul.f32 %v50, %v98
    %v125 = vmul.f32 %v51, %v98
    %v126 = vmul.f32 %v52, %v98
    %v127 = vmul.f32 %v53, %v98
    %v128 = vmul.f32 %v54, %v98
    %v129 = vmul.f32 %v55, %v98
    %v130 = vmul.f32 %v56, %v98
    %v131 = vmul.f32 %v57, %v98
    %v132 = vmul.f32 %v58, %v98
    %v133 = vmul.f32 %v59, %v98
    %v134 = vmul.f32 %v60, %v98
    %v135 = vmul.f32 %v61, %v98
    %v136 = vmul.f32 %v62, %v98
    %v137 = vmul.f32 %v63, %v98
    %v138 = vmul.f32 %v64, %v98
    %v139 = vmul.f32 %v65, %v98
    %v140 = vmul.f32 %v66, %v98
    %v141 = vmul.f32 %v67, %v98
    %v142 = vmul.f32 %v68, %v98
    %v143 = vmul.f32 %v69, %v98
    %v144 = vmul.f32 %v70, %v98
    %v145 = vmul.f32 %v71, %v98
    %v146 = vmul.f32 %v72, %v98
    %v147 = vmul.f32 %v73, %v98
    %v148 = vmul.f32 %v74, %v98
    %v149 = vmul.f32 %v75, %v98
    %v150 = vmul.f32 %v76, %v98
    %v151 = vmul.f32 %v77, %v98
    %v152 = vmul.f32 %v78, %v98
    %v153 = vmul.f32 %v79, %v98
    %v154 = vmul.f32 %v80, %v98
    %v155 = vmul.f32 %v81, %v98
    %v156 = vmul.f32 %v82, %v98
    %v157 = vmul.f32 %v83, %v98
    %v158 = vmul.f32 %v84, %v98
    %v159 = vmul.f32 %v85, %v98
    %v160 = vmul.f32 %v86, %v98
    %v161 = vmul.f32 %v87, %v98
    %v162 = vmul.f32 %v88, %v98
    %v163 = vmul.f32 %v89, %v98
    %s164 = scalar_lea.vmem [#allocation2], 512
    %v165 = vld [vmem:[%s164] sm:$0xff]
    %v166 = vld [vmem:[%s164 + $0x8] sm:$0xff]
    %v167 = vld [vmem:[%s164 + $0x10] sm:$0xff]
    %v168 = vld [vmem:[%s164 + $0x18] sm:$0xff]
    %v169 = vld [vmem:[%s164 + $0x20] sm:$0xff]
    %v170 = vld [vmem:[%s164 + $0x28] sm:$0xff]
    %v171 = vld [vmem:[%s164 + $0x30] sm:$0xff]
    %v172 = vld [vmem:[%s164 + $0x38] sm:$0xff]
    %v173 = vld [vmem:[%s164 + $0x40] sm:$0xff]
    %v174 = vld [vmem:[%s164 + $0x48] sm:$0xff]
    %v175 = vld [vmem:[%s164 + $0x50] sm:$0xff]
    %v176 = vld [vmem:[%s164 + $0x58] sm:$0xff]
    %v177 = vld [vmem:[%s164 + $0x60] sm:$0xff]
    %v178 = vld [vmem:[%s164 + $0x68] sm:$0xff]
    %v179 = vld [vmem:[%s164 + $0x70] sm:$0xff]
    %v180 = vld [vmem:[%s164 + $0x78] sm:$0xff]
    %v181 = vld [vmem:[%s164 + $0x80] sm:$0xff]
    %v182 = vld [vmem:[%s164 + $0x88] sm:$0xff]
    %v183 = vld [vmem:[%s164 + $0x90] sm:$0xff]
    %v184 = vld [vmem:[%s164 + $0x98] sm:$0xff]
    %v185 = vld [vmem:[%s164 + $0xa0] sm:$0xff]
    %v186 = vld [vmem:[%s164 + $0xa8] sm:$0xff]
    %v187 = vld [vmem:[%s164 + $0xb0] sm:$0xff]
    %v188 = vld [vmem:[%s164 + $0xb8] sm:$0xff]
    %v189 = vld [vmem:[%s164 + $0xc0] sm:$0xff]
    %v190 = vld [vmem:[%s164 + $0xc8] sm:$0xff]
    %v191 = vld [vmem:[%s164 + $0xd0] sm:$0xff]
    %v192 = vld [vmem:[%s164 + $0xd8] sm:$0xff]
    %v193 = vld [vmem:[%s164 + $0xe0] sm:$0xff]
    %v194 = vld [vmem:[%s164 + $0xe8] sm:$0xff]
    %v195 = vld [vmem:[%s164 + $0xf0] sm:$0xff]
    %v196 = vld [vmem:[%s164 + $0xf8] sm:$0xff]
    %v197 = vld [vmem:[%s164 + $0x100] sm:$0xff]
    %v198 = vld [vmem:[%s164 + $0x108] sm:$0xff]
    %v199 = vld [vmem:[%s164 + $0x110] sm:$0xff]
    %v200 = vld [vmem:[%s164 + $0x118] sm:$0xff]
    %v201 = vld [vmem:[%s164 + $0x120] sm:$0xff]
    %v202 = vld [vmem:[%s164 + $0x128] sm:$0xff]
    %v203 = vld [vmem:[%s164 + $0x130] sm:$0xff]
    %v204 = vld [vmem:[%s164 + $0x138] sm:$0xff]
    %v205 = vld [vmem:[%s164 + $0x140] sm:$0xff]
    %v206 = vld [vmem:[%s164 + $0x148] sm:$0xff]
    %v207 = vld [vmem:[%s164 + $0x150] sm:$0xff]
    %v208 = vld [vmem:[%s164 + $0x158] sm:$0xff]
    %v209 = vld [vmem:[%s164 + $0x160] sm:$0xff]
    %v210 = vld [vmem:[%s164 + $0x168] sm:$0xff]
    %v211 = vld [vmem:[%s164 + $0x170] sm:$0xff]
    %v212 = vld [vmem:[%s164 + $0x178] sm:$0xff]
    %v213 = vld [vmem:[%s164 + $0x180] sm:$0xff]
    %v214 = vld [vmem:[%s164 + $0x188] sm:$0xff]
    %v215 = vld [vmem:[%s164 + $0x190] sm:$0xff]
    %v216 = vld [vmem:[%s164 + $0x198] sm:$0xff]
    %v217 = vld [vmem:[%s164 + $0x1a0] sm:$0xff]
    %v218 = vld [vmem:[%s164 + $0x1a8] sm:$0xff]
    %v219 = vld [vmem:[%s164 + $0x1b0] sm:$0xff]
    %v220 = vld [vmem:[%s164 + $0x1b8] sm:$0xff]
    %v221 = vld [vmem:[%s164 + $0x1c0] sm:$0xff]
    %v222 = vld [vmem:[%s164 + $0x1c8] sm:$0xff]
    %v223 = vld [vmem:[%s164 + $0x1d0] sm:$0xff]
    %v224 = vld [vmem:[%s164 + $0x1d8] sm:$0xff]
    %v225 = vld [vmem:[%s164 + $0x1e0] sm:$0xff]
    %v226 = vld [vmem:[%s164 + $0x1e8] sm:$0xff]
    %v227 = vld [vmem:[%s164 + $0x1f0] sm:$0xff]
    %v228 = vld [vmem:[%s164 + $0x1f8] sm:$0xff]
    %s229 = scalar_lea.vmem %s0, 1
    %v230 = vld [vmem:[%s229] sm:$0x1]
    %v232 = vlaneseq
    %v233 = vshrl.u32 %v232, 7
    %v234 = vsub.s32 0, %v233
    %v235 = vrot.slane %v230, %v234
    %236 = vset.pattern.permute.xlu0 0
    %237 = vperm.xlu0 %236, %v235
    %v238 = vpop.permute.xlu0 %237
    %v240 = vmul.f32 %v165, %v238
    %v241 = vmul.f32 %v166, %v238
    %v242 = vmul.f32 %v167, %v238
    %v243 = vmul.f32 %v168, %v238
    %v244 = vmul.f32 %v169, %v238
    %v245 = vmul.f32 %v170, %v238
    %v246 = vmul.f32 %v171, %v238
    %v247 = vmul.f32 %v172, %v238
    %v248 = vmul.f32 %v173, %v238
    %v249 = vmul.f32 %v174, %v238
    %v250 = vmul.f32 %v175, %v238
    %v251 = vmul.f32 %v176, %v238
    %v252 = vmul.f32 %v177, %v238
    %v253 = vmul.f32 %v178, %v238
    %v254 = vmul.f32 %v179, %v238
    %v255 = vmul.f32 %v180, %v238
    %v256 = vmul.f32 %v181, %v238
    %v257 = vmul.f32 %v182, %v238
    %v258 = vmul.f32 %v183, %v238
    %v259 = vmul.f32 %v184, %v238
    %v260 = vmul.f32 %v185, %v238
    %v261 = vmul.f32 %v186, %v238
    %v262 = vmul.f32 %v187, %v238
    %v263 = vmul.f32 %v188, %v238
    %v264 = vmul.f32 %v189, %v238
    %v265 = vmul.f32 %v190, %v238
    %v266 = vmul.f32 %v191, %v238
    %v267 = vmul.f32 %v192, %v238
    %v268 = vmul.f32 %v193, %v238
    %v269 = vmul.f32 %v194, %v238
    %v270 = vmul.f32 %v195, %v238
    %v271 = vmul.f32 %v196, %v238
    %v272 = vmul.f32 %v197, %v238
    %v273 = vmul.f32 %v198, %v238
    %v274 = vmul.f32 %v199, %v238
    %v275 = vmul.f32 %v200, %v238
    %v276 = vmul.f32 %v201, %v238
    %v277 = vmul.f32 %v202, %v238
    %v278 = vmul.f32 %v203, %v238
    %v279 = vmul.f32 %v204, %v238
    %v280 = vmul.f32 %v205, %v238
    %v281 = vmul.f32 %v206, %v238
    %v282 = vmul.f32 %v207, %v238
    %v283 = vmul.f32 %v208, %v238
    %v284 = vmul.f32 %v209, %v238
    %v285 = vmul.f32 %v210, %v238
    %v286 = vmul.f32 %v211, %v238
    %v287 = vmul.f32 %v212, %v238
    %v288 = vmul.f32 %v213, %v238
    %v289 = vmul.f32 %v214, %v238
    %v290 = vmul.f32 %v215, %v238
    %v291 = vmul.f32 %v216, %v238
    %v292 = vmul.f32 %v217, %v238
    %v293 = vmul.f32 %v218, %v238
    %v294 = vmul.f32 %v219, %v238
    %v295 = vmul.f32 %v220, %v238
    %v296 = vmul.f32 %v221, %v238
    %v297 = vmul.f32 %v222, %v238
    %v298 = vmul.f32 %v223, %v238
    %v299 = vmul.f32 %v224, %v238
    %v300 = vmul.f32 %v225, %v238
    %v301 = vmul.f32 %v226, %v238
    %v302 = vmul.f32 %v227, %v238
    %v303 = vmul.f32 %v228, %v238
    %v304 = vadd.f32 %v100, %v240
    %v305 = vadd.f32 %v101, %v241
    %v306 = vadd.f32 %v102, %v242
    %v307 = vadd.f32 %v103, %v243
    %v308 = vadd.f32 %v104, %v244
    %v309 = vadd.f32 %v105, %v245
    %v310 = vadd.f32 %v106, %v246
    %v311 = vadd.f32 %v107, %v247
    %v312 = vadd.f32 %v108, %v248
    %v313 = vadd.f32 %v109, %v249
    %v314 = vadd.f32 %v110, %v250
    %v315 = vadd.f32 %v111, %v251
    %v316 = vadd.f32 %v112, %v252
    %v317 = vadd.f32 %v113, %v253
    %v318 = vadd.f32 %v114, %v254
    %v319 = vadd.f32 %v115, %v255
    %v320 = vadd.f32 %v116, %v256
    %v321 = vadd.f32 %v117, %v257
    %v322 = vadd.f32 %v118, %v258
    %v323 = vadd.f32 %v119, %v259
    %v324 = vadd.f32 %v120, %v260
    %v325 = vadd.f32 %v121, %v261
    %v326 = vadd.f32 %v122, %v262
    %v327 = vadd.f32 %v123, %v263
    %v328 = vadd.f32 %v124, %v264
    %v329 = vadd.f32 %v125, %v265
    %v330 = vadd.f32 %v126, %v266
    %v331 = vadd.f32 %v127, %v267
    %v332 = vadd.f32 %v128, %v268
    %v333 = vadd.f32 %v129, %v269
    %v334 = vadd.f32 %v130, %v270
    %v335 = vadd.f32 %v131, %v271
    %v336 = vadd.f32 %v132, %v272
    %v337 = vadd.f32 %v133, %v273
    %v338 = vadd.f32 %v134, %v274
    %v339 = vadd.f32 %v135, %v275
    %v340 = vadd.f32 %v136, %v276
    %v341 = vadd.f32 %v137, %v277
    %v342 = vadd.f32 %v138, %v278
    %v343 = vadd.f32 %v139, %v279
    %v344 = vadd.f32 %v140, %v280
    %v345 = vadd.f32 %v141, %v281
    %v346 = vadd.f32 %v142, %v282
    %v347 = vadd.f32 %v143, %v283
    %v348 = vadd.f32 %v144, %v284
    %v349 = vadd.f32 %v145, %v285
    %v350 = vadd.f32 %v146, %v286
    %v351 = vadd.f32 %v147, %v287
    %v352 = vadd.f32 %v148, %v288
    %v353 = vadd.f32 %v149, %v289
    %v354 = vadd.f32 %v150, %v290
    %v355 = vadd.f32 %v151, %v291
    %v356 = vadd.f32 %v152, %v292
    %v357 = vadd.f32 %v153, %v293
    %v358 = vadd.f32 %v154, %v294
    %v359 = vadd.f32 %v155, %v295
    %v360 = vadd.f32 %v156, %v296
    %v361 = vadd.f32 %v157, %v297
    %v362 = vadd.f32 %v158, %v298
    %v363 = vadd.f32 %v159, %v299
    %v364 = vadd.f32 %v160, %v300
    %v365 = vadd.f32 %v161, %v301
    %v366 = vadd.f32 %v162, %v302
    %v367 = vadd.f32 %v163, %v303
    %s368 = scalar_lea.vmem [#allocation2], 1024
    %v369 = vld [vmem:[%s368] sm:$0xff]
    %v370 = vld [vmem:[%s368 + $0x8] sm:$0xff]
    %v371 = vld [vmem:[%s368 + $0x10] sm:$0xff]
    %v372 = vld [vmem:[%s368 + $0x18] sm:$0xff]
    %v373 = vld [vmem:[%s368 + $0x20] sm:$0xff]
    %v374 = vld [vmem:[%s368 + $0x28] sm:$0xff]
    %v375 = vld [vmem:[%s368 + $0x30] sm:$0xff]
    %v376 = vld [vmem:[%s368 + $0x38] sm:$0xff]
    %v377 = vld [vmem:[%s368 + $0x40] sm:$0xff]
    %v378 = vld [vmem:[%s368 + $0x48] sm:$0xff]
    %v379 = vld [vmem:[%s368 + $0x50] sm:$0xff]
    %v380 = vld [vmem:[%s368 + $0x58] sm:$0xff]
    %v381 = vld [vmem:[%s368 + $0x60] sm:$0xff]
    %v382 = vld [vmem:[%s368 + $0x68] sm:$0xff]
    %v383 = vld [vmem:[%s368 + $0x70] sm:$0xff]
    %v384 = vld [vmem:[%s368 + $0x78] sm:$0xff]
    %v385 = vld [vmem:[%s368 + $0x80] sm:$0xff]
    %v386 = vld [vmem:[%s368 + $0x88] sm:$0xff]
    %v387 = vld [vmem:[%s368 + $0x90] sm:$0xff]
    %v388 = vld [vmem:[%s368 + $0x98] sm:$0xff]
    %v389 = vld [vmem:[%s368 + $0xa0] sm:$0xff]
    %v390 = vld [vmem:[%s368 + $0xa8] sm:$0xff]
    %v391 = vld [vmem:[%s368 + $0xb0] sm:$0xff]
    %v392 = vld [vmem:[%s368 + $0xb8] sm:$0xff]
    %v393 = vld [vmem:[%s368 + $0xc0] sm:$0xff]
    %v394 = vld [vmem:[%s368 + $0xc8] sm:$0xff]
    %v395 = vld [vmem:[%s368 + $0xd0] sm:$0xff]
    %v396 = vld [vmem:[%s368 + $0xd8] sm:$0xff]
    %v397 = vld [vmem:[%s368 + $0xe0] sm:$0xff]
    %v398 = vld [vmem:[%s368 + $0xe8] sm:$0xff]
    %v399 = vld [vmem:[%s368 + $0xf0] sm:$0xff]
    %v400 = vld [vmem:[%s368 + $0xf8] sm:$0xff]
    %v401 = vld [vmem:[%s368 + $0x100] sm:$0xff]
    %v402 = vld [vmem:[%s368 + $0x108] sm:$0xff]
    %v403 = vld [vmem:[%s368 + $0x110] sm:$0xff]
    %v404 = vld [vmem:[%s368 + $0x118] sm:$0xff]
    %v405 = vld [vmem:[%s368 + $0x120] sm:$0xff]
    %v406 = vld [vmem:[%s368 + $0x128] sm:$0xff]
    %v407 = vld [vmem:[%s368 + $0x130] sm:$0xff]
    %v408 = vld [vmem:[%s368 + $0x138] sm:$0xff]
    %v409 = vld [vmem:[%s368 + $0x140] sm:$0xff]
    %v410 = vld [vmem:[%s368 + $0x148] sm:$0xff]
    %v411 = vld [vmem:[%s368 + $0x150] sm:$0xff]
    %v412 = vld [vmem:[%s368 + $0x158] sm:$0xff]
    %v413 = vld [vmem:[%s368 + $0x160] sm:$0xff]
    %v414 = vld [vmem:[%s368 + $0x168] sm:$0xff]
    %v415 = vld [vmem:[%s368 + $0x170] sm:$0xff]
    %v416 = vld [vmem:[%s368 + $0x178] sm:$0xff]
    %v417 = vld [vmem:[%s368 + $0x180] sm:$0xff]
    %v418 = vld [vmem:[%s368 + $0x188] sm:$0xff]
    %v419 = vld [vmem:[%s368 + $0x190] sm:$0xff]
    %v420 = vld [vmem:[%s368 + $0x198] sm:$0xff]
    %v421 = vld [vmem:[%s368 + $0x1a0] sm:$0xff]
    %v422 = vld [vmem:[%s368 + $0x1a8] sm:$0xff]
    %v423 = vld [vmem:[%s368 + $0x1b0] sm:$0xff]
    %v424 = vld [vmem:[%s368 + $0x1b8] sm:$0xff]
    %v425 = vld [vmem:[%s368 + $0x1c0] sm:$0xff]
    %v426 = vld [vmem:[%s368 + $0x1c8] sm:$0xff]
    %v427 = vld [vmem:[%s368 + $0x1d0] sm:$0xff]
    %v428 = vld [vmem:[%s368 + $0x1d8] sm:$0xff]
    %v429 = vld [vmem:[%s368 + $0x1e0] sm:$0xff]
    %v430 = vld [vmem:[%s368 + $0x1e8] sm:$0xff]
    %v431 = vld [vmem:[%s368 + $0x1f0] sm:$0xff]
    %v432 = vld [vmem:[%s368 + $0x1f8] sm:$0xff]
    %s433 = scalar_lea.vmem %s0, 2
    %v434 = vld [vmem:[%s433] sm:$0x1]
    %v436 = vlaneseq
    %v437 = vshrl.u32 %v436, 7
    %v438 = vsub.s32 0, %v437
    %v439 = vrot.slane %v434, %v438
    %440 = vset.pattern.permute.xlu0 0
    %441 = vperm.xlu0 %440, %v439
    %v442 = vpop.permute.xlu0 %441
    %v444 = vmul.f32 %v369, %v442
    %v445 = vmul.f32 %v370, %v442
    %v446 = vmul.f32 %v371, %v442
    %v447 = vmul.f32 %v372, %v442
    %v448 = vmul.f32 %v373, %v442
    %v449 = vmul.f32 %v374, %v442
    %v450 = vmul.f32 %v375, %v442
    %v451 = vmul.f32 %v376, %v442
    %v452 = vmul.f32 %v377, %v442
    %v453 = vmul.f32 %v378, %v442
    %v454 = vmul.f32 %v379, %v442
    %v455 = vmul.f32 %v380, %v442
    %v456 = vmul.f32 %v381, %v442
    %v457 = vmul.f32 %v382, %v442
    %v458 = vmul.f32 %v383, %v442
    %v459 = vmul.f32 %v384, %v442
    %v460 = vmul.f32 %v385, %v442
    %v461 = vmul.f32 %v386, %v442
    %v462 = vmul.f32 %v387, %v442
    %v463 = vmul.f32 %v388, %v442
    %v464 = vmul.f32 %v389, %v442
    %v465 = vmul.f32 %v390, %v442
    %v466 = vmul.f32 %v391, %v442
    %v467 = vmul.f32 %v392, %v442
    %v468 = vmul.f32 %v393, %v442
    %v469 = vmul.f32 %v394, %v442
    %v470 = vmul.f32 %v395, %v442
    %v471 = vmul.f32 %v396, %v442
    %v472 = vmul.f32 %v397, %v442
    %v473 = vmul.f32 %v398, %v442
    %v474 = vmul.f32 %v399, %v442
    %v475 = vmul.f32 %v400, %v442
    %v476 = vmul.f32 %v401, %v442
    %v477 = vmul.f32 %v402, %v442
    %v478 = vmul.f32 %v403, %v442
    %v479 = vmul.f32 %v404, %v442
    %v480 = vmul.f32 %v405, %v442
    %v481 = vmul.f32 %v406, %v442
    %v482 = vmul.f32 %v407, %v442
    %v483 = vmul.f32 %v408, %v442
    %v484 = vmul.f32 %v409, %v442
    %v485 = vmul.f32 %v410, %v442
    %v486 = vmul.f32 %v411, %v442
    %v487 = vmul.f32 %v412, %v442
    %v488 = vmul.f32 %v413, %v442
    %v489 = vmul.f32 %v414, %v442
    %v490 = vmul.f32 %v415, %v442
    %v491 = vmul.f32 %v416, %v442
    %v492 = vmul.f32 %v417, %v442
    %v493 = vmul.f32 %v418, %v442
    %v494 = vmul.f32 %v419, %v442
    %v495 = vmul.f32 %v420, %v442
    %v496 = vmul.f32 %v421, %v442
    %v497 = vmul.f32 %v422, %v442
    %v498 = vmul.f32 %v423, %v442
    %v499 = vmul.f32 %v424, %v442
    %v500 = vmul.f32 %v425, %v442
    %v501 = vmul.f32 %v426, %v442
    %v502 = vmul.f32 %v427, %v442
    %v503 = vmul.f32 %v428, %v442
    %v504 = vmul.f32 %v429, %v442
    %v505 = vmul.f32 %v430, %v442
    %v506 = vmul.f32 %v431, %v442
    %v507 = vmul.f32 %v432, %v442
    %v508 = vadd.f32 %v304, %v444
    %v509 = vadd.f32 %v305, %v445
    %v510 = vadd.f32 %v306, %v446
    %v511 = vadd.f32 %v307, %v447
    %v512 = vadd.f32 %v308, %v448
    %v513 = vadd.f32 %v309, %v449
    %v514 = vadd.f32 %v310, %v450
    %v515 = vadd.f32 %v311, %v451
    %v516 = vadd.f32 %v312, %v452
    %v517 = vadd.f32 %v313, %v453
    %v518 = vadd.f32 %v314, %v454
    %v519 = vadd.f32 %v315, %v455
    %v520 = vadd.f32 %v316, %v456
    %v521 = vadd.f32 %v317, %v457
    %v522 = vadd.f32 %v318, %v458
    %v523 = vadd.f32 %v319, %v459
    %v524 = vadd.f32 %v320, %v460
    %v525 = vadd.f32 %v321, %v461
    %v526 = vadd.f32 %v322, %v462
    %v527 = vadd.f32 %v323, %v463
    %v528 = vadd.f32 %v324, %v464
    %v529 = vadd.f32 %v325, %v465
    %v530 = vadd.f32 %v326, %v466
    %v531 = vadd.f32 %v327, %v467
    %v532 = vadd.f32 %v328, %v468
    %v533 = vadd.f32 %v329, %v469
    %v534 = vadd.f32 %v330, %v470
    %v535 = vadd.f32 %v331, %v471
    %v536 = vadd.f32 %v332, %v472
    %v537 = vadd.f32 %v333, %v473
    %v538 = vadd.f32 %v334, %v474
    %v539 = vadd.f32 %v335, %v475
    %v540 = vadd.f32 %v336, %v476
    %v541 = vadd.f32 %v337, %v477
    %v542 = vadd.f32 %v338, %v478
    %v543 = vadd.f32 %v339, %v479
    %v544 = vadd.f32 %v340, %v480
    %v545 = vadd.f32 %v341, %v481
    %v546 = vadd.f32 %v342, %v482
    %v547 = vadd.f32 %v343, %v483
    %v548 = vadd.f32 %v344, %v484
    %v549 = vadd.f32 %v345, %v485
    %v550 = vadd.f32 %v346, %v486
    %v551 = vadd.f32 %v347, %v487
    %v552 = vadd.f32 %v348, %v488
    %v553 = vadd.f32 %v349, %v489
    %v554 = vadd.f32 %v350, %v490
    %v555 = vadd.f32 %v351, %v491
    %v556 = vadd.f32 %v352, %v492
    %v557 = vadd.f32 %v353, %v493
    %v558 = vadd.f32 %v354, %v494
    %v559 = vadd.f32 %v355, %v495
    %v560 = vadd.f32 %v356, %v496
    %v561 = vadd.f32 %v357, %v497
    %v562 = vadd.f32 %v358, %v498
    %v563 = vadd.f32 %v359, %v499
    %v564 = vadd.f32 %v360, %v500
    %v565 = vadd.f32 %v361, %v501
    %v566 = vadd.f32 %v362, %v502
    %v567 = vadd.f32 %v363, %v503
    %v568 = vadd.f32 %v364, %v504
    %v569 = vadd.f32 %v365, %v505
    %v570 = vadd.f32 %v366, %v506
    %v571 = vadd.f32 %v367, %v507
    %s572 = scalar_lea.vmem [#allocation2], 1536
    %v573 = vld [vmem:[%s572] sm:$0xff]
    %v574 = vld [vmem:[%s572 + $0x8] sm:$0xff]
    %v575 = vld [vmem:[%s572 + $0x10] sm:$0xff]
    %v576 = vld [vmem:[%s572 + $0x18] sm:$0xff]
    %v577 = vld [vmem:[%s572 + $0x20] sm:$0xff]
    %v578 = vld [vmem:[%s572 + $0x28] sm:$0xff]
    %v579 = vld [vmem:[%s572 + $0x30] sm:$0xff]
    %v580 = vld [vmem:[%s572 + $0x38] sm:$0xff]
    %v581 = vld [vmem:[%s572 + $0x40] sm:$0xff]
    %v582 = vld [vmem:[%s572 + $0x48] sm:$0xff]
    %v583 = vld [vmem:[%s572 + $0x50] sm:$0xff]
    %v584 = vld [vmem:[%s572 + $0x58] sm:$0xff]
    %v585 = vld [vmem:[%s572 + $0x60] sm:$0xff]
    %v586 = vld [vmem:[%s572 + $0x68] sm:$0xff]
    %v587 = vld [vmem:[%s572 + $0x70] sm:$0xff]
    %v588 = vld [vmem:[%s572 + $0x78] sm:$0xff]
    %v589 = vld [vmem:[%s572 + $0x80] sm:$0xff]
    %v590 = vld [vmem:[%s572 + $0x88] sm:$0xff]
    %v591 = vld [vmem:[%s572 + $0x90] sm:$0xff]
    %v592 = vld [vmem:[%s572 + $0x98] sm:$0xff]
    %v593 = vld [vmem:[%s572 + $0xa0] sm:$0xff]
    %v594 = vld [vmem:[%s572 + $0xa8] sm:$0xff]
    %v595 = vld [vmem:[%s572 + $0xb0] sm:$0xff]
    %v596 = vld [vmem:[%s572 + $0xb8] sm:$0xff]
    %v597 = vld [vmem:[%s572 + $0xc0] sm:$0xff]
    %v598 = vld [vmem:[%s572 + $0xc8] sm:$0xff]
    %v599 = vld [vmem:[%s572 + $0xd0] sm:$0xff]
    %v600 = vld [vmem:[%s572 + $0xd8] sm:$0xff]
    %v601 = vld [vmem:[%s572 + $0xe0] sm:$0xff]
    %v602 = vld [vmem:[%s572 + $0xe8] sm:$0xff]
    %v603 = vld [vmem:[%s572 + $0xf0] sm:$0xff]
    %v604 = vld [vmem:[%s572 + $0xf8] sm:$0xff]
    %v605 = vld [vmem:[%s572 + $0x100] sm:$0xff]
    %v606 = vld [vmem:[%s572 + $0x108] sm:$0xff]
    %v607 = vld [vmem:[%s572 + $0x110] sm:$0xff]
    %v608 = vld [vmem:[%s572 + $0x118] sm:$0xff]
    %v609 = vld [vmem:[%s572 + $0x120] sm:$0xff]
    %v610 = vld [vmem:[%s572 + $0x128] sm:$0xff]
    %v611 = vld [vmem:[%s572 + $0x130] sm:$0xff]
    %v612 = vld [vmem:[%s572 + $0x138] sm:$0xff]
    %v613 = vld [vmem:[%s572 + $0x140] sm:$0xff]
    %v614 = vld [vmem:[%s572 + $0x148] sm:$0xff]
    %v615 = vld [vmem:[%s572 + $0x150] sm:$0xff]
    %v616 = vld [vmem:[%s572 + $0x158] sm:$0xff]
    %v617 = vld [vmem:[%s572 + $0x160] sm:$0xff]
    %v618 = vld [vmem:[%s572 + $0x168] sm:$0xff]
    %v619 = vld [vmem:[%s572 + $0x170] sm:$0xff]
    %v620 = vld [vmem:[%s572 + $0x178] sm:$0xff]
    %v621 = vld [vmem:[%s572 + $0x180] sm:$0xff]
    %v622 = vld [vmem:[%s572 + $0x188] sm:$0xff]
    %v623 = vld [vmem:[%s572 + $0x190] sm:$0xff]
    %v624 = vld [vmem:[%s572 + $0x198] sm:$0xff]
    %v625 = vld [vmem:[%s572 + $0x1a0] sm:$0xff]
    %v626 = vld [vmem:[%s572 + $0x1a8] sm:$0xff]
    %v627 = vld [vmem:[%s572 + $0x1b0] sm:$0xff]
    %v628 = vld [vmem:[%s572 + $0x1b8] sm:$0xff]
    %v629 = vld [vmem:[%s572 + $0x1c0] sm:$0xff]
    %v630 = vld [vmem:[%s572 + $0x1c8] sm:$0xff]
    %v631 = vld [vmem:[%s572 + $0x1d0] sm:$0xff]
    %v632 = vld [vmem:[%s572 + $0x1d8] sm:$0xff]
    %v633 = vld [vmem:[%s572 + $0x1e0] sm:$0xff]
    %v634 = vld [vmem:[%s572 + $0x1e8] sm:$0xff]
    %v635 = vld [vmem:[%s572 + $0x1f0] sm:$0xff]
    %v636 = vld [vmem:[%s572 + $0x1f8] sm:$0xff]
    %s637 = scalar_lea.vmem %s0, 3
    %v638 = vld [vmem:[%s637] sm:$0x1]
    %v640 = vlaneseq
    %v641 = vshrl.u32 %v640, 7
    %v642 = vsub.s32 0, %v641
    %v643 = vrot.slane %v638, %v642
    %644 = vset.pattern.permute.xlu0 0
    %645 = vperm.xlu0 %644, %v643
    %v646 = vpop.permute.xlu0 %645
    %v648 = vmul.f32 %v573, %v646
    %v649 = vmul.f32 %v574, %v646
    %v650 = vmul.f32 %v575, %v646
    %v651 = vmul.f32 %v576, %v646
    %v652 = vmul.f32 %v577, %v646
    %v653 = vmul.f32 %v578, %v646
    %v654 = vmul.f32 %v579, %v646
    %v655 = vmul.f32 %v580, %v646
    %v656 = vmul.f32 %v581, %v646
    %v657 = vmul.f32 %v582, %v646
    %v658 = vmul.f32 %v583, %v646
    %v659 = vmul.f32 %v584, %v646
    %v660 = vmul.f32 %v585, %v646
    %v661 = vmul.f32 %v586, %v646
    %v662 = vmul.f32 %v587, %v646
    %v663 = vmul.f32 %v588, %v646
    %v664 = vmul.f32 %v589, %v646
    %v665 = vmul.f32 %v590, %v646
    %v666 = vmul.f32 %v591, %v646
    %v667 = vmul.f32 %v592, %v646
    %v668 = vmul.f32 %v593, %v646
    %v669 = vmul.f32 %v594, %v646
    %v670 = vmul.f32 %v595, %v646
    %v671 = vmul.f32 %v596, %v646
    %v672 = vmul.f32 %v597, %v646
    %v673 = vmul.f32 %v598, %v646
    %v674 = vmul.f32 %v599, %v646
    %v675 = vmul.f32 %v600, %v646
    %v676 = vmul.f32 %v601, %v646
    %v677 = vmul.f32 %v602, %v646
    %v678 = vmul.f32 %v603, %v646
    %v679 = vmul.f32 %v604, %v646
    %v680 = vmul.f32 %v605, %v646
    %v681 = vmul.f32 %v606, %v646
    %v682 = vmul.f32 %v607, %v646
    %v683 = vmul.f32 %v608, %v646
    %v684 = vmul.f32 %v609, %v646
    %v685 = vmul.f32 %v610, %v646
    %v686 = vmul.f32 %v611, %v646
    %v687 = vmul.f32 %v612, %v646
    %v688 = vmul.f32 %v613, %v646
    %v689 = vmul.f32 %v614, %v646
    %v690 = vmul.f32 %v615, %v646
    %v691 = vmul.f32 %v616, %v646
    %v692 = vmul.f32 %v617, %v646
    %v693 = vmul.f32 %v618, %v646
    %v694 = vmul.f32 %v619, %v646
    %v695 = vmul.f32 %v620, %v646
    %v696 = vmul.f32 %v621, %v646
    %v697 = vmul.f32 %v622, %v646
    %v698 = vmul.f32 %v623, %v646
    %v699 = vmul.f32 %v624, %v646
    %v700 = vmul.f32 %v625, %v646
    %v701 = vmul.f32 %v626, %v646
    %v702 = vmul.f32 %v627, %v646
    %v703 = vmul.f32 %v628, %v646
    %v704 = vmul.f32 %v629, %v646
    %v705 = vmul.f32 %v630, %v646
    %v706 = vmul.f32 %v631, %v646
    %v707 = vmul.f32 %v632, %v646
    %v708 = vmul.f32 %v633, %v646
    %v709 = vmul.f32 %v634, %v646
    %v710 = vmul.f32 %v635, %v646
    %v711 = vmul.f32 %v636, %v646
    %v712 = vadd.f32 %v508, %v648
    %v713 = vadd.f32 %v509, %v649
    %v714 = vadd.f32 %v510, %v650
    %v715 = vadd.f32 %v511, %v651
    %v716 = vadd.f32 %v512, %v652
    %v717 = vadd.f32 %v513, %v653
    %v718 = vadd.f32 %v514, %v654
    %v719 = vadd.f32 %v515, %v655
    %v720 = vadd.f32 %v516, %v656
    %v721 = vadd.f32 %v517, %v657
    %v722 = vadd.f32 %v518, %v658
    %v723 = vadd.f32 %v519, %v659
    %v724 = vadd.f32 %v520, %v660
    %v725 = vadd.f32 %v521, %v661
    %v726 = vadd.f32 %v522, %v662
    %v727 = vadd.f32 %v523, %v663
    %v728 = vadd.f32 %v524, %v664
    %v729 = vadd.f32 %v525, %v665
    %v730 = vadd.f32 %v526, %v666
    %v731 = vadd.f32 %v527, %v667
    %v732 = vadd.f32 %v528, %v668
    %v733 = vadd.f32 %v529, %v669
    %v734 = vadd.f32 %v530, %v670
    %v735 = vadd.f32 %v531, %v671
    %v736 = vadd.f32 %v532, %v672
    %v737 = vadd.f32 %v533, %v673
    %v738 = vadd.f32 %v534, %v674
    %v739 = vadd.f32 %v535, %v675
    %v740 = vadd.f32 %v536, %v676
    %v741 = vadd.f32 %v537, %v677
    %v742 = vadd.f32 %v538, %v678
    %v743 = vadd.f32 %v539, %v679
    %v744 = vadd.f32 %v540, %v680
    %v745 = vadd.f32 %v541, %v681
    %v746 = vadd.f32 %v542, %v682
    %v747 = vadd.f32 %v543, %v683
    %v748 = vadd.f32 %v544, %v684
    %v749 = vadd.f32 %v545, %v685
    %v750 = vadd.f32 %v546, %v686
    %v751 = vadd.f32 %v547, %v687
    %v752 = vadd.f32 %v548, %v688
    %v753 = vadd.f32 %v549, %v689
    %v754 = vadd.f32 %v550, %v690
    %v755 = vadd.f32 %v551, %v691
    %v756 = vadd.f32 %v552, %v692
    %v757 = vadd.f32 %v553, %v693
    %v758 = vadd.f32 %v554, %v694
    %v759 = vadd.f32 %v555, %v695
    %v760 = vadd.f32 %v556, %v696
    %v761 = vadd.f32 %v557, %v697
    %v762 = vadd.f32 %v558, %v698
    %v763 = vadd.f32 %v559, %v699
    %v764 = vadd.f32 %v560, %v700
    %v765 = vadd.f32 %v561, %v701
    %v766 = vadd.f32 %v562, %v702
    %v767 = vadd.f32 %v563, %v703
    %v768 = vadd.f32 %v564, %v704
    %v769 = vadd.f32 %v565, %v705
    %v770 = vadd.f32 %v566, %v706
    %v771 = vadd.f32 %v567, %v707
    %v772 = vadd.f32 %v568, %v708
    %v773 = vadd.f32 %v569, %v709
    %v774 = vadd.f32 %v570, %v710
    %v775 = vadd.f32 %v571, %v711
    %776 = vst [vmem:[#allocation5] sm:$0xff] %v712
    %777 = vst [vmem:[#allocation5 + $0x8] sm:$0xff] %v713
    %778 = vst [vmem:[#allocation5 + $0x10] sm:$0xff] %v714
    %779 = vst [vmem:[#allocation5 + $0x18] sm:$0xff] %v715
    %780 = vst [vmem:[#allocation5 + $0x20] sm:$0xff] %v716
    %781 = vst [vmem:[#allocation5 + $0x28] sm:$0xff] %v717
    %782 = vst [vmem:[#allocation5 + $0x30] sm:$0xff] %v718
    %783 = vst [vmem:[#allocation5 + $0x38] sm:$0xff] %v719
    %784 = vst [vmem:[#allocation5 + $0x40] sm:$0xff] %v720
    %785 = vst [vmem:[#allocation5 + $0x48] sm:$0xff] %v721
    %786 = vst [vmem:[#allocation5 + $0x50] sm:$0xff] %v722
    %787 = vst [vmem:[#allocation5 + $0x58] sm:$0xff] %v723
    %788 = vst [vmem:[#allocation5 + $0x60] sm:$0xff] %v724
    %789 = vst [vmem:[#allocation5 + $0x68] sm:$0xff] %v725
    %790 = vst [vmem:[#allocation5 + $0x70] sm:$0xff] %v726
    %791 = vst [vmem:[#allocation5 + $0x78] sm:$0xff] %v727
    %792 = vst [vmem:[#allocation5 + $0x80] sm:$0xff] %v728
    %793 = vst [vmem:[#allocation5 + $0x88] sm:$0xff] %v729
    %794 = vst [vmem:[#allocation5 + $0x90] sm:$0xff] %v730
    %795 = vst [vmem:[#allocation5 + $0x98] sm:$0xff] %v731
    %796 = vst [vmem:[#allocation5 + $0xa0] sm:$0xff] %v732
    %797 = vst [vmem:[#allocation5 + $0xa8] sm:$0xff] %v733
    %798 = vst [vmem:[#allocation5 + $0xb0] sm:$0xff] %v734
    %799 = vst [vmem:[#allocation5 + $0xb8] sm:$0xff] %v735
    %800 = vst [vmem:[#allocation5 + $0xc0] sm:$0xff] %v736
    %801 = vst [vmem:[#allocation5 + $0xc8] sm:$0xff] %v737
    %802 = vst [vmem:[#allocation5 + $0xd0] sm:$0xff] %v738
    %803 = vst [vmem:[#allocation5 + $0xd8] sm:$0xff] %v739
    %804 = vst [vmem:[#allocation5 + $0xe0] sm:$0xff] %v740
    %805 = vst [vmem:[#allocation5 + $0xe8] sm:$0xff] %v741
    %806 = vst [vmem:[#allocation5 + $0xf0] sm:$0xff] %v742
    %807 = vst [vmem:[#allocation5 + $0xf8] sm:$0xff] %v743
    %808 = vst [vmem:[#allocation5 + $0x100] sm:$0xff] %v744
    %809 = vst [vmem:[#allocation5 + $0x108] sm:$0xff] %v745
    %810 = vst [vmem:[#allocation5 + $0x110] sm:$0xff] %v746
    %811 = vst [vmem:[#allocation5 + $0x118] sm:$0xff] %v747
    %812 = vst [vmem:[#allocation5 + $0x120] sm:$0xff] %v748
    %813 = vst [vmem:[#allocation5 + $0x128] sm:$0xff] %v749
    %814 = vst [vmem:[#allocation5 + $0x130] sm:$0xff] %v750
    %815 = vst [vmem:[#allocation5 + $0x138] sm:$0xff] %v751
    %816 = vst [vmem:[#allocation5 + $0x140] sm:$0xff] %v752
    %817 = vst [vmem:[#allocation5 + $0x148] sm:$0xff] %v753
    %818 = vst [vmem:[#allocation5 + $0x150] sm:$0xff] %v754
    %819 = vst [vmem:[#allocation5 + $0x158] sm:$0xff] %v755
    %820 = vst [vmem:[#allocation5 + $0x160] sm:$0xff] %v756
    %821 = vst [vmem:[#allocation5 + $0x168] sm:$0xff] %v757
    %822 = vst [vmem:[#allocation5 + $0x170] sm:$0xff] %v758
    %823 = vst [vmem:[#allocation5 + $0x178] sm:$0xff] %v759
    %824 = vst [vmem:[#allocation5 + $0x180] sm:$0xff] %v760
    %825 = vst [vmem:[#allocation5 + $0x188] sm:$0xff] %v761
    %826 = vst [vmem:[#allocation5 + $0x190] sm:$0xff] %v762
    %827 = vst [vmem:[#allocation5 + $0x198] sm:$0xff] %v763
    %828 = vst [vmem:[#allocation5 + $0x1a0] sm:$0xff] %v764
    %829 = vst [vmem:[#allocation5 + $0x1a8] sm:$0xff] %v765
    %830 = vst [vmem:[#allocation5 + $0x1b0] sm:$0xff] %v766
    %831 = vst [vmem:[#allocation5 + $0x1b8] sm:$0xff] %v767
    %832 = vst [vmem:[#allocation5 + $0x1c0] sm:$0xff] %v768
    %833 = vst [vmem:[#allocation5 + $0x1c8] sm:$0xff] %v769
    %834 = vst [vmem:[#allocation5 + $0x1d0] sm:$0xff] %v770
    %835 = vst [vmem:[#allocation5 + $0x1d8] sm:$0xff] %v771
    %836 = vst [vmem:[#allocation5 + $0x1e0] sm:$0xff] %v772
    %837 = vst [vmem:[#allocation5 + $0x1e8] sm:$0xff] %v773
    %838 = vst [vmem:[#allocation5 + $0x1f0] sm:$0xff] %v774
    %839 = vst [vmem:[#allocation5 + $0x1f8] sm:$0xff] %v775
    // Predicated region
    $region14: #{tpu_custom_call.1} parent=1 // pred_check
      _
    $region15: #{tpu_custom_call.1} parent=1 // pred_check_branch
      %841 = sbr.rel (0) target = $region17
    $region16: #{tpu_custom_call.1} parent=1 // pred_region
      %s843 = ssub.s32 8192, 8192
      %844 = vsyncadd [#allocation4], %s843
      %s845 = sshll.u32 [#allocation5], 4
      %s846 = int_to_ptr.vmem [resolvable:$true] %s845
      %851 = dma.vmem_to_hbm [thread:$0]  %s846, 8192, %s2, [#allocation4], 1024, 1024, 64
    $region17: #{tpu_custom_call.1} parent=1 // pred_fallthru
      _
    // Predicated region
    $region18: #{tpu_custom_call.1} parent=1 // pred_check
      _
    $region19: #{tpu_custom_call.1} parent=1 // pred_check_branch
      %853 = sbr.rel (0) target = $region21
    $region20: #{tpu_custom_call.1} parent=1 // pred_region
      %854 = dma.done [#allocation4], 8192
    $region21: #{tpu_custom_call.1} parent=1 // pred_fallthru
      _
    %855 = vsyncpa [#allocation3], 1
    %856 = vsyncpa [#allocation4], 1

</llo_original>
